<compile_context>
chip_gen: v7x
topology: tpu7x:2x2x1
jax: 0.10.0
libtpu: 0.0.40
codegen_flags: <defaults>
</compile_context>

<pallas_src>
import math
import functools

import jax
import jax.numpy as jnp
from jax.experimental import pallas as pl
from jax.experimental.pallas import tpu as pltpu


def _round_up(v, m):
    return ((v + m - 1) // m) * m


def _pick_tile(n, candidates=(512, 256, 128)):
    """Largest 128-aligned tile that divides n (falls back to full dim)."""
    for c in candidates:
        if n % c == 0:
            return c
    return n


# ---------------------------------------------------------------------------
# Input projection: h0 = relu(x @ w_in + b_in)   (tiled rows, megacore-parallel)
# ---------------------------------------------------------------------------
def _linear_kernel(x_ref, w_ref, b_ref, o_ref, *, apply_relu):
    y = jnp.dot(x_ref[...], w_ref[...], preferred_element_type=jnp.float32)
    y = y + b_ref[...]                      # (1, dout) broadcasts over rows
    if apply_relu:
        y = jnp.maximum(y, 0.0)
    o_ref[...] = y.astype(o_ref.dtype)


def linear(x, w, b2, *, apply_relu=False):
    """x:[N,Din] @ w:[Din,Dout] + b2:[1,Dout] -> [N,Dout] (f32)."""
    n, din = x.shape
    dout = w.shape[1]
    tr = _pick_tile(n)
    kernel = functools.partial(_linear_kernel, apply_relu=apply_relu)
    return pl.pallas_call(
        kernel,
        out_shape=jax.ShapeDtypeStruct((n, dout), jnp.float32),
        grid=(n // tr,),
        in_specs=[
            pl.BlockSpec((tr, din), lambda i: (i, 0)),
            pl.BlockSpec((din, dout), lambda i: (0, 0)),
            pl.BlockSpec((1, dout), lambda i: (0, 0)),
        ],
        out_specs=pl.BlockSpec((tr, dout), lambda i: (i, 0)),
        compiler_params=pltpu.CompilerParams(
            dimension_semantics=("parallel",),
            vmem_limit_bytes=32 * 1024 * 1024),
    )(x, w, b2)


# ---------------------------------------------------------------------------
# Fused GCNII layer stack + output projection.
#   grid = (layer l, row tile r, contraction tile k)
#   h of the previous layer lives in VMEM scratch (two ping-pong buffers).
# ---------------------------------------------------------------------------
def _gcnii_stack_kernel(adj_ref, h0_ref, weff_ref, wout_ref, bout_ref, o_ref,
                        acc_ref, ha_ref, hb_ref, *, alpha, tile_r, tile_k):
    l = pl.program_id(0)
    r = pl.program_id(1)
    k = pl.program_id(2)
    nl = pl.num_programs(0)
    nk = pl.num_programs(2)

    # ---- init -------------------------------------------------------------
    @pl.when(k == 0)
    def _():
        acc_ref[...] = jnp.zeros_like(acc_ref)

    # Output block (r, 0) is revisited at every layer; keep every HBM
    # write-back of it deterministic (real values are written at l == nl-1).
    @pl.when(jnp.logical_and(k == 0, l < nl - 1))
    def _():
        o_ref[...] = jnp.zeros_like(o_ref)

    # ---- accumulate one K tile of A @ h^(l-1) -------------------------------
    row_k = pl.multiple_of(k * tile_k, tile_k)
    h0_blk = h0_ref[pl.ds(row_k, tile_k), :]
    ha_blk = ha_ref[pl.ds(row_k, tile_k), :]
    hb_blk = hb_ref[pl.ds(row_k, tile_k), :]
    read_a = (l & 1) == 1                   # layer l reads what layer l-1 wrote
    h_prev = jnp.where(l == 0, h0_blk, jnp.where(read_a, ha_blk, hb_blk))

    a_blk = adj_ref[...]
    acc_ref[...] += jnp.dot(a_blk, h_prev.astype(a_blk.dtype),
                            preferred_element_type=jnp.float32)

    # ---- epilogue: finish this row tile of layer l --------------------------
    @pl.when(k == nk - 1)
    def _():
        row_r = pl.multiple_of(r * tile_r, tile_r)
        h0_r = h0_ref[pl.ds(row_r, tile_r), :]
        support = (1.0 - alpha) * acc_ref[...] + alpha * h0_r
        # GCNII update folded into one matmul: W_eff = theta*W + (1-theta)*I.
        h_new = jnp.maximum(
            jnp.dot(support, weff_ref[...], preferred_element_type=jnp.float32),
            0.0)

        write_a = (l & 1) == 0

        @pl.when(write_a)
        def _():
            ha_ref[pl.ds(row_r, tile_r), :] = h_new

        @pl.when(jnp.logical_not(write_a))
        def _():
            hb_ref[pl.ds(row_r, tile_r), :] = h_new

        # Fused output projection (output_fcs) on the last layer.
        @pl.when(l == nl - 1)
        def _():
            o_ref[...] = (jnp.dot(h_new, wout_ref[...],
                                  preferred_element_type=jnp.float32)
                          + bout_ref[...]).astype(o_ref.dtype)


def gcnii_stack(adjs, h0, w_eff, w_out, b_out, *, alpha):
    """Run all GCNII layers + output projection in one pipelined pallas_call.

    adjs:  [L, N, N]      dense normalized adjacency per layer (f32 or bf16)
    h0:    [N, HDp]       activated input projection (also the initial h)
    w_eff: [L, HDp, HDp]  theta_l*W_l + (1-theta_l)*I, zero-padded
    w_out: [HDp, Cp], b_out: [1, Cp]
    returns [N, Cp] f32 (lane-dense logits slab, slice real classes outside)
    """
    num_layers, n, n2 = adjs.shape
    assert n == n2 and n == h0.shape[0]
    hd_p = h0.shape[1]
    c_p = w_out.shape[1]
    tr = _pick_tile(n)
    tk = _pick_tile(n)

    kernel = functools.partial(_gcnii_stack_kernel, alpha=float(alpha),
                               tile_r=tr, tile_k=tk)
    return pl.pallas_call(
        kernel,
        out_shape=jax.ShapeDtypeStruct((n, c_p), jnp.float32),
        grid=(num_layers, n // tr, n // tk),
        in_specs=[
            # adjacency tile of layer l: streamed + double-buffered by Pallas
            pl.BlockSpec((None, tr, tk), lambda l, r, k: (l, r, k)),
            # h0 resident in VMEM (read both as K blocks and as R blocks)
            pl.BlockSpec((n, hd_p), lambda l, r, k: (0, 0)),
            # per-layer folded weight, resident across the (r, k) loops
            pl.BlockSpec((None, hd_p, hd_p), lambda l, r, k: (l, 0, 0)),
            # output projection weight & bias, resident
            pl.BlockSpec((hd_p, c_p), lambda l, r, k: (0, 0)),
            pl.BlockSpec((1, c_p), lambda l, r, k: (0, 0)),
        ],
        out_specs=pl.BlockSpec((tr, c_p), lambda l, r, k: (r, 0)),
        scratch_shapes=[
            pltpu.VMEM((tr, hd_p), jnp.float32),    # A@h accumulator
            pltpu.VMEM((n, hd_p), jnp.float32),     # h buffer (even layers write)
            pltpu.VMEM((n, hd_p), jnp.float32),     # h buffer (odd layers write)
        ],
        compiler_params=pltpu.CompilerParams(
            # layer axis: sequential dependence through the h ping-pong buffers;
            # row axis: shares those buffers (cannot be megacore-parallel here);
            # k axis: reduction.
            dimension_semantics=("arbitrary", "arbitrary", "arbitrary"),
            vmem_limit_bytes=32 * 1024 * 1024),
    )(adjs, h0, w_eff, w_out, b_out)


# ---------------------------------------------------------------------------
# GCNII forward (padding / weight folding in plain JAX, hot path in Pallas)
# ---------------------------------------------------------------------------
def gcnii_forward(nodeblocks, x, params, *, alpha, lamda,
                  adjacency_dtype=jnp.float32):
    n, fdim = x.shape
    hdim = params["w_in"].shape[1]
    ncls = params["w_out"].shape[1]
    num_layers = len(nodeblocks)
    hd_p = _round_up(hdim, 128)     # lane-dense hidden width
    c_p = _round_up(ncls, 128)      # lane-dense logits slab (sliced below)

    f32 = jnp.float32
    w_in = jnp.pad(params["w_in"].astype(f32), ((0, 0), (0, hd_p - hdim)))
    b_in = jnp.pad(params["b_in"].astype(f32), (0, hd_p - hdim)).reshape(1, hd_p)
    w_out = jnp.pad(params["w_out"].astype(f32),
                    ((0, hd_p - hdim), (0, c_p - ncls)))
    b_out = jnp.pad(params["b_out"].astype(f32), (0, c_p - ncls)).reshape(1, c_p)

    eye = jnp.eye(hdim, dtype=f32)
    thetas = [math.log(lamda / (i + 1) + 1.0) for i in range(num_layers)]
    w_eff = jnp.stack([
        jnp.pad(th * w_l.astype(f32) + (1.0 - th) * eye,
                ((0, hd_p - hdim), (0, hd_p - hdim)))
        for w_l, th in zip(params["layer_ws"], thetas)
    ])                                                   # [L, HDp, HDp]
    adjs = jnp.stack([a.astype(adjacency_dtype) for a in nodeblocks])  # [L,N,N]

    # BatchNorm1d(affine=False) result is discarded (`h = dropout(x)` right
    # after it in the original forward) and dropout(p=0) is identity, so the
    # network starts from x directly.
    h0 = linear(x.astype(f32), w_in, b_in, apply_relu=True)   # input_fcs + ReLU
    out_p = gcnii_stack(adjs, h0, w_eff, w_out, b_out, alpha=alpha)
    return out_p[:, :ncls]


def gcnii_forward_ref(nodeblocks, x, params, *, alpha, lamda):
    """Pure-jnp reference (original, un-folded formulation)."""
    h = jnp.maximum(x @ params["w_in"] + params["b_in"], 0.0)
    h0 = h
    for i, (adj, w_l) in enumerate(zip(nodeblocks, params["layer_ws"])):
        theta = math.log(lamda / (i + 1) + 1.0)
        hi = adj @ h
        support = (1.0 - alpha) * hi + alpha * h0
        h = jnp.maximum(theta * (support @ w_l) + (1.0 - theta) * support, 0.0)
    return h @ params["w_out"] + params["b_out"]


# ---------------------------------------------------------------------------
if __name__ == "__main__":
    # Small, TPU-friendly shapes.
    num_nodes = 128
    features_dim = 32
    hidden_dim = 64
    num_classes = 8
    num_layers = 2
    alpha, lamda = 0.1, 0.5

    key = jax.random.PRNGKey(0)
    ks = jax.random.split(key, 8)

    x = jax.random.normal(ks[0], (num_nodes, features_dim), dtype=jnp.float32)

    def glorot(k, shape):
        limit = math.sqrt(6.0 / (shape[0] + shape[1]))
        return jax.random.uniform(k, shape, jnp.float32, -limit, limit)

    params = {
        "w_in": glorot(ks[1], (features_dim, hidden_dim)),
        "b_in": jax.random.uniform(ks[2], (hidden_dim,), jnp.float32, -0.1, 0.1),
        "w_out": glorot(ks[3], (hidden_dim, num_classes)),
        "b_out": jax.random.uniform(ks[4], (num_classes,), jnp.float32, -0.1, 0.1),
        "layer_ws": [glorot(k, (hidden_dim, hidden_dim))
                     for k in jax.random.split(ks[5], num_layers)],
    }

    # Per-layer dense normalized adjacency (symmetric norm with self-loops).
    nodeblocks = []
    for k in jax.random.split(ks[6], num_layers):
        a = (jax.random.uniform(k, (num_nodes, num_nodes)) < 0.05).astype(jnp.float32)
        a = jnp.maximum(a, a.T) + jnp.eye(num_nodes, dtype=jnp.float32)
        d_inv_sqrt = 1.0 / jnp.sqrt(jnp.sum(a, axis=1))
        nodeblocks.append(a * d_inv_sqrt[:, None] * d_inv_sqrt[None, :])

    ref = gcnii_forward_ref(nodeblocks, x, params, alpha=alpha, lamda=lamda)

    # f32 path: tight check against the reference.
    out = gcnii_forward(nodeblocks, x, params, alpha=alpha, lamda=lamda)
    out = jax.block_until_ready(out)
    assert out.shape == (num_nodes, num_classes)
    assert jnp.allclose(out, ref, atol=2e-3, rtol=2e-3), "mismatch vs reference"

    # bf16-adjacency path (halves HBM bytes for the dominant stream); loose
    # tolerance since it intentionally trades precision for bandwidth.
    out_bf16 = gcnii_forward(nodeblocks, x, params, alpha=alpha, lamda=lamda,
                             adjacency_dtype=jnp.bfloat16)
    out_bf16 = jax.block_until_ready(out_bf16)
    assert out_bf16.shape == (num_nodes, num_classes)
    assert bool(jnp.all(jnp.isfinite(out_bf16)))
    assert jnp.allclose(out_bf16, ref, atol=5e-2, rtol=5e-2), "bf16 path diverged"

    print("KERNEL_OK")
</pallas_src>

<mosaic_0001>
module attributes {stable_mosaic.version = 11 : i64} {
  func.func @_linear_kernel(%arg0: i32, %arg1: memref<128x32xf32, #tpu.memory_space<vmem>>, %arg2: memref<32x128xf32, #tpu.memory_space<vmem>>, %arg3: memref<1x128xf32, #tpu.memory_space<vmem>>, %arg4: memref<128x128xf32, #tpu.memory_space<vmem>>) attributes {dimension_semantics = [#tpu.dimension_semantics<parallel>], iteration_bounds = array<i64: 1>, scalar_prefetch = 0 : i64, scratch_operands = 0 : i64, tpu.core_type = #tpu.core_type<tc>, window_params = [{transform_indices = @transform_0, window_bounds = array<i64: 128, 32>}, {pipeline_mode = #tpu.pipeline_mode<synchronous>, transform_indices = @transform_1, window_bounds = array<i64: 32, 128>}, {pipeline_mode = #tpu.pipeline_mode<synchronous>, transform_indices = @transform_2, window_bounds = array<i64: 1, 128>}, {transform_indices = @transform_3, window_bounds = array<i64: 128, 128>}]} {
    %c0 = arith.constant 0 : index
    %c0_0 = arith.constant 0 : index
    %0 = vector.load %arg1[%c0, %c0_0] : memref<128x32xf32, #tpu.memory_space<vmem>>, vector<128x32xf32>
    %c0_1 = arith.constant 0 : index
    %c0_2 = arith.constant 0 : index
    %1 = vector.load %arg2[%c0_1, %c0_2] : memref<32x128xf32, #tpu.memory_space<vmem>>, vector<32x128xf32>
    %cst = arith.constant dense<0.000000e+00> : vector<128x128xf32>
    %2 = tpu.matmul %0, %1, %cst {dimension_numbers = #tpu.dot_dimension_numbers<[1], [0], [0], [1], [0, 0, 1, 1], [], []>} : vector<128x32xf32>, vector<32x128xf32>, vector<128x128xf32> -> vector<128x128xf32>
    %c0_3 = arith.constant 0 : index
    %c0_4 = arith.constant 0 : index
    %3 = vector.load %arg3[%c0_3, %c0_4] : memref<1x128xf32, #tpu.memory_space<vmem>>, vector<1x128xf32>
    %4 = vector.broadcast %3 : vector<1x128xf32> to vector<128x128xf32>
    %5 = arith.addf %2, %4 : vector<128x128xf32>
    %cst_5 = arith.constant 0.000000e+00 : f32
    %6 = vector.broadcast %cst_5 : f32 to vector<128x128xf32>
    %7 = arith.maximumf %5, %6 : vector<128x128xf32>
    %c0_6 = arith.constant 0 : index
    %c0_7 = arith.constant 0 : index
    %8 = vector.load %arg4[%c0_6, %c0_7] : memref<128x128xf32, #tpu.memory_space<vmem>>, vector<128x128xf32>
    tpu.vector_store %arg4[%c0_6, %c0_7], %7 {strides = array<i32>} : memref<128x128xf32, #tpu.memory_space<vmem>>, vector<128x128xf32>,
    return
  }
  func.func @transform_0(%arg0: i32) -> (i32, i32) {
    %c0_i32 = arith.constant 0 : i32
    %c0_i32_0 = arith.constant 0 : i32
    return %arg0, %c0_i32 : i32, i32
  }
  func.func @transform_1(%arg0: i32) -> (i32, i32) {
    %c0_i32 = arith.constant 0 : i32
    %c0_i32_0 = arith.constant 0 : i32
    %c0_i32_1 = arith.constant 0 : i32
    return %c0_i32, %c0_i32_0 : i32, i32
  }
  func.func @transform_2(%arg0: i32) -> (i32, i32) {
    %c0_i32 = arith.constant 0 : i32
    %c0_i32_0 = arith.constant 0 : i32
    %c0_i32_1 = arith.constant 0 : i32
    return %c0_i32, %c0_i32_0 : i32, i32
  }
  func.func @transform_3(%arg0: i32) -> (i32, i32) {
    %c0_i32 = arith.constant 0 : i32
    %c0_i32_0 = arith.constant 0 : i32
    return %arg0, %c0_i32 : i32, i32
  }
}

</mosaic_0001>

<llo_original>
// kernel: tpu_custom_call.1
$region0: #{tpu_custom_call.1}
  #allocation0 [shape = 'u32[]', space=smem, size = 0x4, offset = 0x4, fixed_abs, tag = 'smem constant byte address 0x4 - core index']
  #allocation1 [shape = 'u32[144,128]{1,0:T(1,128)}', space=vmem, size = 0x12000, scoped, tag = 'internal scratch']
  %s0 = inlined_call_operand.vmem [shape: f32[128,32], index: 0, kind: input, shape index: {}]
  %s1 = inlined_call_operand.vmem [shape: f32[32,128], index: 1, kind: input, shape index: {}]
  %s2 = inlined_call_operand.vmem [shape: f32[1,128], index: 2, kind: input, shape index: {}]
  %s3 = inlined_call_operand.hbm [shape: f32[128,128], index: 3, kind: output, shape index: {}]
  %s4 = sld [smem:[#allocation0]]
  $region22: #{tpu_custom_call.1} parent=0
    _
  %s6 = ssub.s32 1, %s4
  %s7 = scalar_select 0, %s6, %s4
  $region1: #{tpu_custom_call.1} parent=0
    #allocation2 [shape = 'u8[65536]{0}', space=vmem, size = 0x10000, scoped, tag = 'output window, operand 0, single buffered']
    #allocation3 [shape = 's32[1]{0}', space=sflag, size = 0x4, scoped, tag = 'scoped memory for tpu_custom_call.1']
    %8 = vsyncpa [#allocation3], 0
    // Predicated region
    $region2: #{tpu_custom_call.1} parent=1 // pred_check
      _
    $region3: #{tpu_custom_call.1} parent=1 // pred_check_branch
      %10 = sbr.rel (0) target = $region5
    $region4: #{tpu_custom_call.1} parent=1 // pred_region
      _
    $region5: #{tpu_custom_call.1} parent=1 // pred_fallthru
      _
    // Predicated region
    $region6: #{tpu_custom_call.1} parent=1 // pred_check
      _
    $region7: #{tpu_custom_call.1} parent=1 // pred_check_branch
      %12 = sbr.rel (0) target = $region9
    $region8: #{tpu_custom_call.1} parent=1 // pred_region
      _
    $region9: #{tpu_custom_call.1} parent=1 // pred_fallthru
      _
    // Predicated region
    $region10: #{tpu_custom_call.1} parent=1 // pred_check
      _
    $region11: #{tpu_custom_call.1} parent=1 // pred_check_branch
      %14 = sbr.rel (0) target = $region13
    $region12: #{tpu_custom_call.1} parent=1 // pred_region
      _
    $region13: #{tpu_custom_call.1} parent=1 // pred_fallthru
      _
    %v15 = vld [vmem:[%s0] sm:$0xff]
    %v16 = vld [vmem:[%s0 + $0x8] sm:$0xff]
    %v17 = vld [vmem:[%s0 + $0x10] sm:$0xff]
    %v18 = vld [vmem:[%s0 + $0x18] sm:$0xff]
    %v19 = vld [vmem:[%s0 + $0x20] sm:$0xff]
    %v20 = vld [vmem:[%s0 + $0x28] sm:$0xff]
    %v21 = vld [vmem:[%s0 + $0x30] sm:$0xff]
    %v22 = vld [vmem:[%s0 + $0x38] sm:$0xff]
    %v23 = vld [vmem:[%s0 + $0x40] sm:$0xff]
    %v24 = vld [vmem:[%s0 + $0x48] sm:$0xff]
    %v25 = vld [vmem:[%s0 + $0x50] sm:$0xff]
    %v26 = vld [vmem:[%s0 + $0x58] sm:$0xff]
    %v27 = vld [vmem:[%s0 + $0x60] sm:$0xff]
    %v28 = vld [vmem:[%s0 + $0x68] sm:$0xff]
    %v29 = vld [vmem:[%s0 + $0x70] sm:$0xff]
    %v30 = vld [vmem:[%s0 + $0x78] sm:$0xff]
    %v31 = vld [vmem:[%s1] sm:$0xff]
    %v32 = vld [vmem:[%s1 + $0x8] sm:$0xff]
    %v33 = vld [vmem:[%s1 + $0x10] sm:$0xff]
    %v34 = vld [vmem:[%s1 + $0x18] sm:$0xff]
    %v35 = vld [vmem:[%s2] sm:$0x1]
    %v37 = vlaneseq
    %v38 = vshrl.u32 %v37, 7
    %v39 = vsub.s32 0, %v38
    %v40 = vrot.slane %v35, %v39
    %vm42 = vcmask 261120
    %v44 = vsel %vm42, %v15, 0
    %v47 = vsel %vm42, %v16, 0
    %v50 = vsel %vm42, %v17, 0
    %v53 = vsel %vm42, %v18, 0
    %v56 = vsel %vm42, %v19, 0
    %v59 = vsel %vm42, %v20, 0
    %v62 = vsel %vm42, %v21, 0
    %v65 = vsel %vm42, %v22, 0
    %v68 = vsel %vm42, %v23, 0
    %v71 = vsel %vm42, %v24, 0
    %v74 = vsel %vm42, %v25, 0
    %v77 = vsel %vm42, %v26, 0
    %v80 = vsel %vm42, %v27, 0
    %v83 = vsel %vm42, %v28, 0
    %v86 = vsel %vm42, %v29, 0
    %v89 = vsel %vm42, %v30, 0
    %91 = vmatprep.subr.mxu0 0.0
    %92 = vmatpush1.msra.mxu0 %v31
    %93 = vmatprep.subr.mxu0 0.0
    %94 = vmatpush1.msra.mxu0 %v32
    %95 = vmatprep.subr.mxu0 0.0
    %96 = vmatpush1.msra.mxu0 %v33
    %97 = vmatprep.subr.mxu0 0.0
    %98 = vmatpush1.msra.mxu0 %v34
    %99 = vmatprep.subr.mxu0 0.0
    %100 = vmatpush1.msra.mxu0 0.0
    %101 = vmatprep.subr.mxu0 0.0
    %102 = vmatpush1.msra.mxu0 0.0
    %103 = vmatprep.subr.mxu0 0.0
    %104 = vmatpush1.msra.mxu0 0.0
    %105 = vmatprep.subr.mxu0 0.0
    %106 = vmatpush1.msra.mxu0 0.0
    %107 = vmatprep.subr.mxu0 0.0
    %108 = vmatpush1.msra.mxu0 0.0
    %109 = vmatprep.subr.mxu0 0.0
    %110 = vmatpush1.msra.mxu0 0.0
    %111 = vmatprep.subr.mxu0 0.0
    %112 = vmatpush1.msra.mxu0 0.0
    %113 = vmatprep.subr.mxu0 0.0
    %114 = vmatpush1.msra.mxu0 0.0
    %115 = vmatprep.subr.mxu0 0.0
    %116 = vmatpush1.msra.mxu0 0.0
    %117 = vmatprep.subr.mxu0 0.0
    %118 = vmatpush1.msra.mxu0 0.0
    %119 = vmatprep.subr.mxu0 0.0
    %120 = vmatpush1.msra.mxu0 0.0
    %121 = vmatprep.subr.mxu0 0.0
    %122 = vmatpush1.msra.mxu0 0.0
    %123 = vmatprep.subr.mxu0 0.0
    %124 = vmatpush1.msra.mxu0 0.0
    %125 = vmatprep.subr.mxu0 0.0
    %126 = vmatpush1.msra.mxu0 0.0
    %127 = vmatprep.subr.mxu0 0.0
    %128 = vmatpush1.msra.mxu0 0.0
    %129 = vmatprep.subr.mxu0 0.0
    %130 = vmatpush1.msra.mxu0 0.0
    %131 = vmatprep.subr.mxu0 0.0
    %132 = vmatpush1.msra.mxu0 0.0
    %133 = vmatprep.subr.mxu0 0.0
    %134 = vmatpush1.msra.mxu0 0.0
    %135 = vmatprep.subr.mxu0 0.0
    %136 = vmatpush1.msra.mxu0 0.0
    %137 = vmatprep.subr.mxu0 0.0
    %138 = vmatpush1.msra.mxu0 0.0
    %139 = vmatprep.subr.mxu0 0.0
    %140 = vmatpush1.msra.mxu0 0.0
    %141 = vmatprep.subr.mxu0 0.0
    %142 = vmatpush1.msra.mxu0 0.0
    %143 = vmatprep.subr.mxu0 0.0
    %144 = vmatpush1.msra.mxu0 0.0
    %145 = vmatprep.subr.mxu0 0.0
    %146 = vmatpush1.msra.mxu0 0.0
    %147 = vmatprep.subr.mxu0 0.0
    %148 = vmatpush1.msra.mxu0 0.0
    %149 = vmatprep.subr.mxu0 0.0
    %150 = vmatpush1.msra.mxu0 0.0
    %151 = vmatprep.subr.mxu0 0.0
    %152 = vmatpush1.msra.mxu0 0.0
    %153 = vmatprep.subr.mxu0 0.0
    %154 = vmatpush1.msra.mxu0 0.0
    %155 = vmatprep.mubr.f32.mxu0 0.0
    %156 = vmatmul.mubr.f32.gmra.mrb[0].mxu0 %v44
    %v157 = vpop.f32.mrb[0].mxu0
    %v158 = vadd.f32 %v40, %v157
    %v159 = vpop.f32.mrb[0].mxu0
    %160 = vmatprep.mubr.f32.mxu0 0.0
    %161 = vmatmul.mubr.f32.gmra.mrb[0].mxu0 %v47
    %v162 = vpop.f32.mrb[0].mxu0
    %v163 = vadd.f32 %v40, %v162
    %v164 = vpop.f32.mrb[0].mxu0
    %165 = vmatprep.mubr.f32.mxu0 0.0
    %166 = vmatmul.mubr.f32.gmra.mrb[0].mxu0 %v50
    %v167 = vpop.f32.mrb[0].mxu0
    %v168 = vadd.f32 %v40, %v167
    %v169 = vpop.f32.mrb[0].mxu0
    %170 = vmatprep.mubr.f32.mxu0 0.0
    %171 = vmatmul.mubr.f32.gmra.mrb[0].mxu0 %v53
    %v172 = vpop.f32.mrb[0].mxu0
    %v173 = vadd.f32 %v40, %v172
    %v174 = vpop.f32.mrb[0].mxu0
    %175 = vmatprep.mubr.f32.mxu0 0.0
    %176 = vmatmul.mubr.f32.gmra.mrb[0].mxu0 %v56
    %v177 = vpop.f32.mrb[0].mxu0
    %v178 = vadd.f32 %v40, %v177
    %v179 = vpop.f32.mrb[0].mxu0
    %180 = vmatprep.mubr.f32.mxu0 0.0
    %181 = vmatmul.mubr.f32.gmra.mrb[0].mxu0 %v59
    %v182 = vpop.f32.mrb[0].mxu0
    %v183 = vadd.f32 %v40, %v182
    %v184 = vpop.f32.mrb[0].mxu0
    %185 = vmatprep.mubr.f32.mxu0 0.0
    %186 = vmatmul.mubr.f32.gmra.mrb[0].mxu0 %v62
    %v187 = vpop.f32.mrb[0].mxu0
    %v188 = vadd.f32 %v40, %v187
    %v189 = vpop.f32.mrb[0].mxu0
    %190 = vmatprep.mubr.f32.mxu0 0.0
    %191 = vmatmul.mubr.f32.gmra.mrb[0].mxu0 %v65
    %v192 = vpop.f32.mrb[0].mxu0
    %v193 = vadd.f32 %v40, %v192
    %v194 = vpop.f32.mrb[0].mxu0
    %195 = vmatprep.mubr.f32.mxu0 0.0
    %196 = vmatmul.mubr.f32.gmra.mrb[0].mxu0 %v68
    %v197 = vpop.f32.mrb[0].mxu0
    %v198 = vadd.f32 %v40, %v197
    %v199 = vpop.f32.mrb[0].mxu0
    %200 = vmatprep.mubr.f32.mxu0 0.0
    %201 = vmatmul.mubr.f32.gmra.mrb[0].mxu0 %v71
    %v202 = vpop.f32.mrb[0].mxu0
    %v203 = vadd.f32 %v40, %v202
    %v204 = vpop.f32.mrb[0].mxu0
    %205 = vmatprep.mubr.f32.mxu0 0.0
    %206 = vmatmul.mubr.f32.gmra.mrb[0].mxu0 %v74
    %v207 = vpop.f32.mrb[0].mxu0
    %v208 = vadd.f32 %v40, %v207
    %v209 = vpop.f32.mrb[0].mxu0
    %210 = vmatprep.mubr.f32.mxu0 0.0
    %211 = vmatmul.mubr.f32.gmra.mrb[0].mxu0 %v77
    %v212 = vpop.f32.mrb[0].mxu0
    %v213 = vadd.f32 %v40, %v212
    %v214 = vpop.f32.mrb[0].mxu0
    %215 = vmatprep.mubr.f32.mxu0 0.0
    %216 = vmatmul.mubr.f32.gmra.mrb[0].mxu0 %v80
    %v217 = vpop.f32.mrb[0].mxu0
    %v218 = vadd.f32 %v40, %v217
    %v219 = vpop.f32.mrb[0].mxu0
    %220 = vmatprep.mubr.f32.mxu0 0.0
    %221 = vmatmul.mubr.f32.gmra.mrb[0].mxu0 %v83
    %v222 = vpop.f32.mrb[0].mxu0
    %v223 = vadd.f32 %v40, %v222
    %v224 = vpop.f32.mrb[0].mxu0
    %225 = vmatprep.mubr.f32.mxu0 0.0
    %226 = vmatmul.mubr.f32.gmra.mrb[0].mxu0 %v86
    %v227 = vpop.f32.mrb[0].mxu0
    %v228 = vadd.f32 %v40, %v227
    %v229 = vpop.f32.mrb[0].mxu0
    %230 = vmatprep.mubr.f32.mxu0 0.0
    %231 = vmatmul.mubr.f32.gmra.mrb[0].mxu0 %v89
    %v232 = vpop.f32.mrb[0].mxu0
    %v233 = vadd.f32 %v40, %v232
    %v234 = vpop.f32.mrb[0].mxu0
    %235 = vdwg.mxu0
    %v236 = vmax.f32 %v158, 0.0
    %v237 = vmax.f32 %v163, 0.0
    %v238 = vmax.f32 %v168, 0.0
    %v239 = vmax.f32 %v173, 0.0
    %v240 = vmax.f32 %v178, 0.0
    %v241 = vmax.f32 %v183, 0.0
    %v242 = vmax.f32 %v188, 0.0
    %v243 = vmax.f32 %v193, 0.0
    %v244 = vmax.f32 %v198, 0.0
    %v245 = vmax.f32 %v203, 0.0
    %v246 = vmax.f32 %v208, 0.0
    %v247 = vmax.f32 %v213, 0.0
    %v248 = vmax.f32 %v218, 0.0
    %v249 = vmax.f32 %v223, 0.0
    %v250 = vmax.f32 %v228, 0.0
    %v251 = vmax.f32 %v233, 0.0
    %252 = vst [vmem:[#allocation2] sm:$0xff] %v236
    %253 = vst [vmem:[#allocation2 + $0x8] sm:$0xff] %v237
    %254 = vst [vmem:[#allocation2 + $0x10] sm:$0xff] %v238
    %255 = vst [vmem:[#allocation2 + $0x18] sm:$0xff] %v239
    %256 = vst [vmem:[#allocation2 + $0x20] sm:$0xff] %v240
    %257 = vst [vmem:[#allocation2 + $0x28] sm:$0xff] %v241
    %258 = vst [vmem:[#allocation2 + $0x30] sm:$0xff] %v242
    %259 = vst [vmem:[#allocation2 + $0x38] sm:$0xff] %v243
    %260 = vst [vmem:[#allocation2 + $0x40] sm:$0xff] %v244
    %261 = vst [vmem:[#allocation2 + $0x48] sm:$0xff] %v245
    %262 = vst [vmem:[#allocation2 + $0x50] sm:$0xff] %v246
    %263 = vst [vmem:[#allocation2 + $0x58] sm:$0xff] %v247
    %264 = vst [vmem:[#allocation2 + $0x60] sm:$0xff] %v248
    %265 = vst [vmem:[#allocation2 + $0x68] sm:$0xff] %v249
    %266 = vst [vmem:[#allocation2 + $0x70] sm:$0xff] %v250
    %267 = vst [vmem:[#allocation2 + $0x78] sm:$0xff] %v251
    // Predicated region
    $region14: #{tpu_custom_call.1} parent=1 // pred_check
      _
    $region15: #{tpu_custom_call.1} parent=1 // pred_check_branch
      %269 = sbr.rel (0) target = $region17
    $region16: #{tpu_custom_call.1} parent=1 // pred_region
      %s271 = ssub.s32 2048, 2048
      %272 = vsyncadd [#allocation3], %s271
      %s273 = sshll.u32 [#allocation2], 4
      %s274 = int_to_ptr.vmem [resolvable:$true] %s273
      %279 = dma.vmem_to_hbm [thread:$0]  %s274, 2048, %s3, [#allocation3], 128, 128, 8
    $region17: #{tpu_custom_call.1} parent=1 // pred_fallthru
      _
    // Predicated region
    $region18: #{tpu_custom_call.1} parent=1 // pred_check
      _
    $region19: #{tpu_custom_call.1} parent=1 // pred_check_branch
      %281 = sbr.rel (0) target = $region21
    $region20: #{tpu_custom_call.1} parent=1 // pred_region
      %282 = dma.done [#allocation3], 2048
    $region21: #{tpu_custom_call.1} parent=1 // pred_fallthru
      _
    %283 = vsyncpa [#allocation3], 1

</llo_original>
